<compile_context>
chip_gen: v7x
topology: tpu7x:2x2x1
jax: 0.10.0
libtpu: 0.0.40
codegen_flags: <defaults>
</compile_context>

<pallas_src>
import jax
import jax.numpy as jnp
from jax.experimental import pallas as pl
from jax.experimental.pallas import tpu as pltpu

FEATURE_IN = 384      # cls layer input dim (output of the unused fc branch)
NUM_CLASSES = 7
N_PAD = 128           # lane-dense padded output width (full vreg lane count)
TB_MAX = 1024         # batch tile: 1024*384*4 B = 1.5 MiB per x buffer


def _round_up(x, m):
    return ((x + m - 1) // m) * m


def _linear_kernel(x_ref, w_ref, b_ref, o_ref):
    # (TB, 384) @ (384, 128) on the MXU, f32 accumulate, bias add on the VPU.
    acc = jnp.dot(x_ref[...], w_ref[...], preferred_element_type=jnp.float32)
    o_ref[...] = (acc + b_ref[...]).astype(o_ref.dtype)


def classifier_forward(x, cls_w, cls_b):
    """logits = x @ cls_w.T + cls_b

    x:      (B, 384)
    cls_w:  (7, 384)   -- PyTorch nn.Linear weight layout
    cls_b:  (7,)
    returns (B, 7), same dtype as x.
    """
    B, K = x.shape
    assert K == FEATURE_IN
    assert cls_w.shape == (NUM_CLASSES, FEATURE_IN)
    assert cls_b.shape == (NUM_CLASSES,)

    # Lane-dense parameters: pad N from 7 -> 128 once at wrapper time.  The
    # padded columns are zero and are sliced away after the call.
    w_pad = (jnp.zeros((FEATURE_IN, N_PAD), x.dtype)
             .at[:, :NUM_CLASSES].set(cls_w.T.astype(x.dtype)))
    b_pad = (jnp.zeros((1, N_PAD), jnp.float32)
             .at[0, :NUM_CLASSES].set(cls_b.astype(jnp.float32)))

    # Batch tiling: small batches run as one 8-aligned block; large batches
    # are streamed TB_MAX rows at a time with double-buffered BlockSpecs.
    tb = min(TB_MAX, _round_up(B, 8))
    b_rows = _round_up(B, tb)
    if b_rows != B:
        x = jnp.pad(x, ((0, b_rows - B), (0, 0)))
    grid = (b_rows // tb,)

    itemsize = jnp.dtype(x.dtype).itemsize
    cost = pl.CostEstimate(
        flops=2 * b_rows * FEATURE_IN * N_PAD,
        transcendentals=0,
        bytes_accessed=(b_rows * FEATURE_IN * itemsize      # read x
                        + b_rows * N_PAD * itemsize         # write logits
                        + FEATURE_IN * N_PAD * itemsize     # read W
                        + N_PAD * 4),                       # read bias
    )

    out = pl.pallas_call(
        _linear_kernel,
        out_shape=jax.ShapeDtypeStruct((b_rows, N_PAD), x.dtype),
        grid=grid,
        in_specs=[
            pl.BlockSpec((tb, FEATURE_IN), lambda i: (i, 0)),     # streamed
            pl.BlockSpec((FEATURE_IN, N_PAD), lambda i: (0, 0)),  # resident
            pl.BlockSpec((1, N_PAD), lambda i: (0, 0)),           # resident
        ],
        out_specs=pl.BlockSpec((tb, N_PAD), lambda i: (i, 0)),
        compiler_params=pltpu.CompilerParams(
            dimension_semantics=("parallel",)),
        cost_estimate=cost,
    )(x, w_pad, b_pad)

    return out[:B, :NUM_CLASSES]


def init_params(key, feature_dim=512, num_classes=NUM_CLASSES):
    """Deterministic synthetic parameters matching Classifier.__init__ shapes."""
    k_fc_w, _, k_cls_w, k_cls_b = jax.random.split(key, 4)
    # fc: Linear(feature_dim, 384) + ReLU -- constructed but unused in forward().
    fc_w = jax.random.normal(k_fc_w, (384, feature_dim), jnp.float32) * 0.02
    fc_b = jnp.zeros((384,), jnp.float32)
    # cls: Linear(384, num_classes) -- the layer actually used in forward().
    cls_w = jax.random.normal(k_cls_w, (num_classes, 384), jnp.float32) * 0.02
    cls_b = jax.random.normal(k_cls_b, (num_classes,), jnp.float32) * 0.02
    return {"fc_w": fc_w, "fc_b": fc_b, "cls_w": cls_w, "cls_b": cls_b}


if __name__ == "__main__":
    key = jax.random.PRNGKey(0)
    params = init_params(key)
    cls_w, cls_b = params["cls_w"], params["cls_b"]

    # Small demo batch (note: at B=8 the call is launch-overhead bound; the
    # Pallas path pays off once B is in the thousands, where the batch-tiled
    # grid streams x at close to HBM roofline).
    B = 8
    x = jax.random.normal(jax.random.PRNGKey(1), (B, FEATURE_IN), jnp.float32)

    logits = classifier_forward(x, cls_w, cls_b)
    jax.block_until_ready(logits)

    ref = x @ cls_w.T + cls_b[None, :]
    assert logits.shape == (B, NUM_CLASSES)
    assert jnp.allclose(logits, ref, atol=1e-4, rtol=1e-4)

    # Also exercise the padding / batch-tiling path (B not 8-aligned).
    B2 = 260
    x2 = jax.random.normal(jax.random.PRNGKey(2), (B2, FEATURE_IN), jnp.float32)
    logits2 = classifier_forward(x2, cls_w, cls_b)
    jax.block_until_ready(logits2)
    ref2 = x2 @ cls_w.T + cls_b[None, :]
    assert logits2.shape == (B2, NUM_CLASSES)
    assert jnp.allclose(logits2, ref2, atol=1e-4, rtol=1e-4)

    print("KERNEL_OK")
</pallas_src>

<mosaic_0001>
module attributes {stable_mosaic.version = 11 : i64} {
  func.func @_linear_kernel(%arg0: i32, %arg1: memref<8x384xf32, #tpu.memory_space<vmem>>, %arg2: memref<384x128xf32, #tpu.memory_space<vmem>>, %arg3: memref<1x128xf32, #tpu.memory_space<vmem>>, %arg4: memref<8x128xf32, #tpu.memory_space<vmem>>) attributes {dimension_semantics = [#tpu.dimension_semantics<parallel>], iteration_bounds = array<i64: 1>, scalar_prefetch = 0 : i64, scratch_operands = 0 : i64, tpu.core_type = #tpu.core_type<tc>, window_params = [{transform_indices = @transform_0, window_bounds = array<i64: 8, 384>}, {pipeline_mode = #tpu.pipeline_mode<synchronous>, transform_indices = @transform_1, window_bounds = array<i64: 384, 128>}, {pipeline_mode = #tpu.pipeline_mode<synchronous>, transform_indices = @transform_2, window_bounds = array<i64: 1, 128>}, {transform_indices = @transform_3, window_bounds = array<i64: 8, 128>}]} {
    %c0 = arith.constant 0 : index
    %c0_0 = arith.constant 0 : index
    %0 = vector.load %arg1[%c0, %c0_0] : memref<8x384xf32, #tpu.memory_space<vmem>>, vector<8x384xf32>
    %c0_1 = arith.constant 0 : index
    %c0_2 = arith.constant 0 : index
    %1 = vector.load %arg2[%c0_1, %c0_2] : memref<384x128xf32, #tpu.memory_space<vmem>>, vector<384x128xf32>
    %cst = arith.constant dense<0.000000e+00> : vector<8x128xf32>
    %2 = tpu.matmul %0, %1, %cst {dimension_numbers = #tpu.dot_dimension_numbers<[1], [0], [0], [1], [0, 0, 1, 1], [], []>} : vector<8x384xf32>, vector<384x128xf32>, vector<8x128xf32> -> vector<8x128xf32>
    %c0_3 = arith.constant 0 : index
    %c0_4 = arith.constant 0 : index
    %3 = vector.load %arg3[%c0_3, %c0_4] : memref<1x128xf32, #tpu.memory_space<vmem>>, vector<1x128xf32>
    %4 = vector.broadcast %3 : vector<1x128xf32> to vector<8x128xf32>
    %5 = arith.addf %2, %4 : vector<8x128xf32>
    %c0_5 = arith.constant 0 : index
    %c0_6 = arith.constant 0 : index
    %6 = vector.load %arg4[%c0_5, %c0_6] : memref<8x128xf32, #tpu.memory_space<vmem>>, vector<8x128xf32>
    tpu.vector_store %arg4[%c0_5, %c0_6], %5 {strides = array<i32>} : memref<8x128xf32, #tpu.memory_space<vmem>>, vector<8x128xf32>,
    return
  }
  func.func @transform_0(%arg0: i32) -> (i32, i32) {
    %c0_i32 = arith.constant 0 : i32
    %c0_i32_0 = arith.constant 0 : i32
    return %arg0, %c0_i32 : i32, i32
  }
  func.func @transform_1(%arg0: i32) -> (i32, i32) {
    %c0_i32 = arith.constant 0 : i32
    %c0_i32_0 = arith.constant 0 : i32
    %c0_i32_1 = arith.constant 0 : i32
    return %c0_i32, %c0_i32_0 : i32, i32
  }
  func.func @transform_2(%arg0: i32) -> (i32, i32) {
    %c0_i32 = arith.constant 0 : i32
    %c0_i32_0 = arith.constant 0 : i32
    %c0_i32_1 = arith.constant 0 : i32
    return %c0_i32, %c0_i32_0 : i32, i32
  }
  func.func @transform_3(%arg0: i32) -> (i32, i32) {
    %c0_i32 = arith.constant 0 : i32
    %c0_i32_0 = arith.constant 0 : i32
    return %arg0, %c0_i32 : i32, i32
  }
}

</mosaic_0001>

<llo_original>
// kernel: tpu_custom_call.1
$region0: #{tpu_custom_call.1}
  #allocation0 [shape = 'u32[]', space=smem, size = 0x4, offset = 0x4, fixed_abs, tag = 'smem constant byte address 0x4 - core index']
  #allocation1 [shape = 'u32[144,128]{1,0:T(1,128)}', space=vmem, size = 0x12000, scoped, tag = 'internal scratch']
  %s0 = inlined_call_operand.hbm [shape: f32[8,384], index: 0, kind: input, shape index: {}]
  %s1 = inlined_call_operand.hbm [shape: f32[384,128], index: 1, kind: input, shape index: {}]
  %s2 = inlined_call_operand.vmem [shape: f32[1,128], index: 2, kind: input, shape index: {}]
  %s3 = inlined_call_operand.hbm [shape: f32[8,128], index: 3, kind: output, shape index: {}]
  %s4 = sld [smem:[#allocation0]]
  $region30: #{tpu_custom_call.1} parent=0
    _
  %s6 = ssub.s32 1, %s4
  %s7 = scalar_select 0, %s6, %s4
  $region1: #{tpu_custom_call.1} parent=0
    #allocation2 [shape = 'u8[12288]{0}', space=vmem, size = 0x3000, scoped, tag = 'input window, operand 0, single buffered']
    #allocation3 [shape = 's32[1]{0}', space=sflag, size = 0x4, scoped, tag = 'scoped memory for tpu_custom_call.1']
    #allocation4 [shape = 's32[1]{0}', space=sflag, size = 0x4, scoped, tag = 'scoped memory for tpu_custom_call.1']
    #allocation5 [shape = 'u8[196608]{0}', space=vmem, size = 0x30000, scoped, tag = 'input window, operand 1, single buffered']
    #allocation6 [shape = 's32[1]{0}', space=sflag, size = 0x4, scoped, tag = 'scoped memory for tpu_custom_call.1']
    #allocation7 [shape = 'u8[4096]{0}', space=vmem, size = 0x1000, scoped, tag = 'output window, operand 0, single buffered']
    %8 = vsyncpa [#allocation3], 0
    %9 = vsyncpa [#allocation6], 0
    %10 = vsyncpa [#allocation4], 0
    // Predicated region
    $region2: #{tpu_custom_call.1} parent=1 // pred_check
      _
    $region3: #{tpu_custom_call.1} parent=1 // pred_check_branch
      %12 = sbr.rel (0) target = $region5
    $region4: #{tpu_custom_call.1} parent=1 // pred_region
      %s14 = ssub.s32 384, 384
      %15 = vsyncadd [#allocation3], %s14
      %s17 = sshll.u32 [#allocation2], 4
      %s18 = int_to_ptr.vmem [resolvable:$true] %s17
      %20 = dma.hbm_to_vmem [thread:$0]  %s0, 384, %s18, [#allocation3]
    $region5: #{tpu_custom_call.1} parent=1 // pred_fallthru
      _
    // Predicated region
    $region6: #{tpu_custom_call.1} parent=1 // pred_check
      _
    $region7: #{tpu_custom_call.1} parent=1 // pred_check_branch
      %22 = sbr.rel (0) target = $region9
    $region8: #{tpu_custom_call.1} parent=1 // pred_region
      %s24 = ssub.s32 6144, 6144
      %25 = vsyncadd [#allocation6], %s24
      %s26 = sshll.u32 [#allocation5], 4
      %s27 = int_to_ptr.vmem [resolvable:$true] %s26
      %32 = dma.hbm_to_vmem [thread:$0]  %s1, 6144, %s27, [#allocation6], 128, 128, 8
    $region9: #{tpu_custom_call.1} parent=1 // pred_fallthru
      _
    // Predicated region
    $region10: #{tpu_custom_call.1} parent=1 // pred_check
      _
    $region11: #{tpu_custom_call.1} parent=1 // pred_check_branch
      %34 = sbr.rel (0) target = $region13
    $region12: #{tpu_custom_call.1} parent=1 // pred_region
      _
    $region13: #{tpu_custom_call.1} parent=1 // pred_fallthru
      _
    // Predicated region
    $region14: #{tpu_custom_call.1} parent=1 // pred_check
      _
    $region15: #{tpu_custom_call.1} parent=1 // pred_check_branch
      %36 = sbr.rel (0) target = $region17
    $region16: #{tpu_custom_call.1} parent=1 // pred_region
      %37 = dma.done [#allocation3], 384
    $region17: #{tpu_custom_call.1} parent=1 // pred_fallthru
      _
    // Predicated region
    $region18: #{tpu_custom_call.1} parent=1 // pred_check
      _
    $region19: #{tpu_custom_call.1} parent=1 // pred_check_branch
      %39 = sbr.rel (0) target = $region21
    $region20: #{tpu_custom_call.1} parent=1 // pred_region
      %40 = dma.done [#allocation6], 6144
    $region21: #{tpu_custom_call.1} parent=1 // pred_fallthru
      _
    %v41 = vld [vmem:[#allocation2] sm:$0xff]
    %v42 = vld [vmem:[#allocation2 + $0x8] sm:$0xff]
    %v43 = vld [vmem:[#allocation2 + $0x10] sm:$0xff]
    %v44 = vld [vmem:[#allocation5] sm:$0xff]
    %v45 = vld [vmem:[#allocation5 + $0x8] sm:$0xff]
    %v46 = vld [vmem:[#allocation5 + $0x10] sm:$0xff]
    %v47 = vld [vmem:[#allocation5 + $0x18] sm:$0xff]
    %v48 = vld [vmem:[#allocation5 + $0x20] sm:$0xff]
    %v49 = vld [vmem:[#allocation5 + $0x28] sm:$0xff]
    %v50 = vld [vmem:[#allocation5 + $0x30] sm:$0xff]
    %v51 = vld [vmem:[#allocation5 + $0x38] sm:$0xff]
    %v52 = vld [vmem:[#allocation5 + $0x40] sm:$0xff]
    %v53 = vld [vmem:[#allocation5 + $0x48] sm:$0xff]
    %v54 = vld [vmem:[#allocation5 + $0x50] sm:$0xff]
    %v55 = vld [vmem:[#allocation5 + $0x58] sm:$0xff]
    %v56 = vld [vmem:[#allocation5 + $0x60] sm:$0xff]
    %v57 = vld [vmem:[#allocation5 + $0x68] sm:$0xff]
    %v58 = vld [vmem:[#allocation5 + $0x70] sm:$0xff]
    %v59 = vld [vmem:[#allocation5 + $0x78] sm:$0xff]
    %v60 = vld [vmem:[#allocation5 + $0x80] sm:$0xff]
    %v61 = vld [vmem:[#allocation5 + $0x88] sm:$0xff]
    %v62 = vld [vmem:[#allocation5 + $0x90] sm:$0xff]
    %v63 = vld [vmem:[#allocation5 + $0x98] sm:$0xff]
    %v64 = vld [vmem:[#allocation5 + $0xa0] sm:$0xff]
    %v65 = vld [vmem:[#allocation5 + $0xa8] sm:$0xff]
    %v66 = vld [vmem:[#allocation5 + $0xb0] sm:$0xff]
    %v67 = vld [vmem:[#allocation5 + $0xb8] sm:$0xff]
    %v68 = vld [vmem:[#allocation5 + $0xc0] sm:$0xff]
    %v69 = vld [vmem:[#allocation5 + $0xc8] sm:$0xff]
    %v70 = vld [vmem:[#allocation5 + $0xd0] sm:$0xff]
    %v71 = vld [vmem:[#allocation5 + $0xd8] sm:$0xff]
    %v72 = vld [vmem:[#allocation5 + $0xe0] sm:$0xff]
    %v73 = vld [vmem:[#allocation5 + $0xe8] sm:$0xff]
    %v74 = vld [vmem:[#allocation5 + $0xf0] sm:$0xff]
    %v75 = vld [vmem:[#allocation5 + $0xf8] sm:$0xff]
    %v76 = vld [vmem:[#allocation5 + $0x100] sm:$0xff]
    %v77 = vld [vmem:[#allocation5 + $0x108] sm:$0xff]
    %v78 = vld [vmem:[#allocation5 + $0x110] sm:$0xff]
    %v79 = vld [vmem:[#allocation5 + $0x118] sm:$0xff]
    %v80 = vld [vmem:[#allocation5 + $0x120] sm:$0xff]
    %v81 = vld [vmem:[#allocation5 + $0x128] sm:$0xff]
    %v82 = vld [vmem:[#allocation5 + $0x130] sm:$0xff]
    %v83 = vld [vmem:[#allocation5 + $0x138] sm:$0xff]
    %v84 = vld [vmem:[#allocation5 + $0x140] sm:$0xff]
    %v85 = vld [vmem:[#allocation5 + $0x148] sm:$0xff]
    %v86 = vld [vmem:[#allocation5 + $0x150] sm:$0xff]
    %v87 = vld [vmem:[#allocation5 + $0x158] sm:$0xff]
    %v88 = vld [vmem:[#allocation5 + $0x160] sm:$0xff]
    %v89 = vld [vmem:[#allocation5 + $0x168] sm:$0xff]
    %v90 = vld [vmem:[#allocation5 + $0x170] sm:$0xff]
    %v91 = vld [vmem:[#allocation5 + $0x178] sm:$0xff]
    %v92 = vld [vmem:[%s2] sm:$0x1]
    %v94 = vlaneseq
    %v95 = vshrl.u32 %v94, 7
    %v96 = vsub.s32 0, %v95
    %v97 = vrot.slane %v92, %v96
    %99 = vmatprep.subr.mxu0 0.0
    %100 = vmatpush1.msra.mxu0 %v44
    %101 = vmatprep.subr.mxu0 0.0
    %102 = vmatpush1.msra.mxu0 %v45
    %103 = vmatprep.subr.mxu0 0.0
    %104 = vmatpush1.msra.mxu0 %v46
    %105 = vmatprep.subr.mxu0 0.0
    %106 = vmatpush1.msra.mxu0 %v47
    %107 = vmatprep.subr.mxu0 0.0
    %108 = vmatpush1.msra.mxu0 %v48
    %109 = vmatprep.subr.mxu0 0.0
    %110 = vmatpush1.msra.mxu0 %v49
    %111 = vmatprep.subr.mxu0 0.0
    %112 = vmatpush1.msra.mxu0 %v50
    %113 = vmatprep.subr.mxu0 0.0
    %114 = vmatpush1.msra.mxu0 %v51
    %115 = vmatprep.subr.mxu0 0.0
    %116 = vmatpush1.msra.mxu0 %v52
    %117 = vmatprep.subr.mxu0 0.0
    %118 = vmatpush1.msra.mxu0 %v53
    %119 = vmatprep.subr.mxu0 0.0
    %120 = vmatpush1.msra.mxu0 %v54
    %121 = vmatprep.subr.mxu0 0.0
    %122 = vmatpush1.msra.mxu0 %v55
    %123 = vmatprep.subr.mxu0 0.0
    %124 = vmatpush1.msra.mxu0 %v56
    %125 = vmatprep.subr.mxu0 0.0
    %126 = vmatpush1.msra.mxu0 %v57
    %127 = vmatprep.subr.mxu0 0.0
    %128 = vmatpush1.msra.mxu0 %v58
    %129 = vmatprep.subr.mxu0 0.0
    %130 = vmatpush1.msra.mxu0 %v59
    %131 = vmatprep.subr.mxu0 0.0
    %132 = vmatpush1.msra.mxu0 %v60
    %133 = vmatprep.subr.mxu0 0.0
    %134 = vmatpush1.msra.mxu0 %v61
    %135 = vmatprep.subr.mxu0 0.0
    %136 = vmatpush1.msra.mxu0 %v62
    %137 = vmatprep.subr.mxu0 0.0
    %138 = vmatpush1.msra.mxu0 %v63
    %139 = vmatprep.subr.mxu0 0.0
    %140 = vmatpush1.msra.mxu0 %v64
    %141 = vmatprep.subr.mxu0 0.0
    %142 = vmatpush1.msra.mxu0 %v65
    %143 = vmatprep.subr.mxu0 0.0
    %144 = vmatpush1.msra.mxu0 %v66
    %145 = vmatprep.subr.mxu0 0.0
    %146 = vmatpush1.msra.mxu0 %v67
    %147 = vmatprep.subr.mxu0 0.0
    %148 = vmatpush1.msra.mxu0 %v68
    %149 = vmatprep.subr.mxu0 0.0
    %150 = vmatpush1.msra.mxu0 %v69
    %151 = vmatprep.subr.mxu0 0.0
    %152 = vmatpush1.msra.mxu0 %v70
    %153 = vmatprep.subr.mxu0 0.0
    %154 = vmatpush1.msra.mxu0 %v71
    %155 = vmatprep.subr.mxu0 0.0
    %156 = vmatpush1.msra.mxu0 %v72
    %157 = vmatprep.subr.mxu0 0.0
    %158 = vmatpush1.msra.mxu0 %v73
    %159 = vmatprep.subr.mxu0 0.0
    %160 = vmatpush1.msra.mxu0 %v74
    %161 = vmatprep.subr.mxu0 0.0
    %162 = vmatpush1.msra.mxu0 %v75
    %163 = vmatprep.mubr.f32.mxu0 %v42
    %164 = vmatmul.mubr.f32.gmra.mrb[0].mxu0 %v41
    %v165 = vpop.f32.mrb[0].mxu0
    %v166 = vadd.f32 %v97, %v165
    %v167 = vpop.f32.mrb[0].mxu0
    %168 = vdwg.mxu0
    %169 = vmatprep.subr.mxu0 0.0
    %170 = vmatpush1.msra.mxu0 %v76
    %171 = vmatprep.subr.mxu0 0.0
    %172 = vmatpush1.msra.mxu0 %v77
    %173 = vmatprep.subr.mxu0 0.0
    %174 = vmatpush1.msra.mxu0 %v78
    %175 = vmatprep.subr.mxu0 0.0
    %176 = vmatpush1.msra.mxu0 %v79
    %177 = vmatprep.subr.mxu0 0.0
    %178 = vmatpush1.msra.mxu0 %v80
    %179 = vmatprep.subr.mxu0 0.0
    %180 = vmatpush1.msra.mxu0 %v81
    %181 = vmatprep.subr.mxu0 0.0
    %182 = vmatpush1.msra.mxu0 %v82
    %183 = vmatprep.subr.mxu0 0.0
    %184 = vmatpush1.msra.mxu0 %v83
    %185 = vmatprep.subr.mxu0 0.0
    %186 = vmatpush1.msra.mxu0 %v84
    %187 = vmatprep.subr.mxu0 0.0
    %188 = vmatpush1.msra.mxu0 %v85
    %189 = vmatprep.subr.mxu0 0.0
    %190 = vmatpush1.msra.mxu0 %v86
    %191 = vmatprep.subr.mxu0 0.0
    %192 = vmatpush1.msra.mxu0 %v87
    %193 = vmatprep.subr.mxu0 0.0
    %194 = vmatpush1.msra.mxu0 %v88
    %195 = vmatprep.subr.mxu0 0.0
    %196 = vmatpush1.msra.mxu0 %v89
    %197 = vmatprep.subr.mxu0 0.0
    %198 = vmatpush1.msra.mxu0 %v90
    %199 = vmatprep.subr.mxu0 0.0
    %200 = vmatpush1.msra.mxu0 %v91
    %201 = vmatprep.subr.mxu0 0.0
    %202 = vmatpush1.msra.mxu0 0.0
    %203 = vmatprep.subr.mxu0 0.0
    %204 = vmatpush1.msra.mxu0 0.0
    %205 = vmatprep.subr.mxu0 0.0
    %206 = vmatpush1.msra.mxu0 0.0
    %207 = vmatprep.subr.mxu0 0.0
    %208 = vmatpush1.msra.mxu0 0.0
    %209 = vmatprep.subr.mxu0 0.0
    %210 = vmatpush1.msra.mxu0 0.0
    %211 = vmatprep.subr.mxu0 0.0
    %212 = vmatpush1.msra.mxu0 0.0
    %213 = vmatprep.subr.mxu0 0.0
    %214 = vmatpush1.msra.mxu0 0.0
    %215 = vmatprep.subr.mxu0 0.0
    %216 = vmatpush1.msra.mxu0 0.0
    %217 = vmatprep.subr.mxu0 0.0
    %218 = vmatpush1.msra.mxu0 0.0
    %219 = vmatprep.subr.mxu0 0.0
    %220 = vmatpush1.msra.mxu0 0.0
    %221 = vmatprep.subr.mxu0 0.0
    %222 = vmatpush1.msra.mxu0 0.0
    %223 = vmatprep.subr.mxu0 0.0
    %224 = vmatpush1.msra.mxu0 0.0
    %225 = vmatprep.subr.mxu0 0.0
    %226 = vmatpush1.msra.mxu0 0.0
    %227 = vmatprep.subr.mxu0 0.0
    %228 = vmatpush1.msra.mxu0 0.0
    %229 = vmatprep.subr.mxu0 0.0
    %230 = vmatpush1.msra.mxu0 0.0
    %231 = vmatprep.subr.mxu0 0.0
    %232 = vmatpush1.msra.mxu0 0.0
    %233 = vmatprep.mubr.f32.mxu0 0.0
    %234 = vmatmul.mubr.f32.gmra.mrb[0].mxu0 %v43
    %v235 = vpop.f32.mrb[0].mxu0
    %v236 = vadd.f32 %v166, %v235
    %v237 = vpop.f32.mrb[0].mxu0
    %238 = vdwg.mxu0
    %239 = vst [vmem:[#allocation7] sm:$0xff] %v236
    // Predicated region
    $region22: #{tpu_custom_call.1} parent=1 // pred_check
      _
    $region23: #{tpu_custom_call.1} parent=1 // pred_check_branch
      %241 = sbr.rel (0) target = $region25
    $region24: #{tpu_custom_call.1} parent=1 // pred_region
      %s243 = ssub.s32 128, 128
      %244 = vsyncadd [#allocation4], %s243
      %s246 = sshll.u32 [#allocation7], 4
      %s247 = int_to_ptr.vmem [resolvable:$true] %s246
      %249 = dma.vmem_to_hbm [thread:$0]  %s247, 128, %s3, [#allocation4]
    $region25: #{tpu_custom_call.1} parent=1 // pred_fallthru
      _
    // Predicated region
    $region26: #{tpu_custom_call.1} parent=1 // pred_check
      _
    $region27: #{tpu_custom_call.1} parent=1 // pred_check_branch
      %251 = sbr.rel (0) target = $region29
    $region28: #{tpu_custom_call.1} parent=1 // pred_region
      %252 = dma.done [#allocation4], 128
    $region29: #{tpu_custom_call.1} parent=1 // pred_fallthru
      _
    %253 = vsyncpa [#allocation3], 1
    %254 = vsyncpa [#allocation6], 1
    %255 = vsyncpa [#allocation4], 1

</llo_original>
